<compile_context>
chip_gen: v5e
topology: v5e:2x2
jax: 0.10.0
libtpu: 0.0.40
codegen_flags: <defaults>
</compile_context>

<pallas_src>
import functools

import jax
import jax.numpy as jnp
import numpy as np
from jax.experimental import pallas as pl
from jax.experimental.pallas import tpu as pltpu


def _bottleneck_kernel(x_ref, w1_ref, b1_ref, w2_ref, b2_ref, m_ref,
                       w3_ref, b3_ref, o_ref, *, H, W):
    # x_ref  : (1, Cin, H*W)     f32, spatial flattened on the lane axis
    # w1_ref : (Cmid, Cin)       bf16, BN1 scale folded into rows
    # b1_ref : (Cmid, 1)         f32 folded BN1 shift
    # w2_ref : (9, Cmid, Cmid)   bf16, tap-major (kh*3+kw), BN2 scale folded
    # b2_ref : (Cmid, 1)         f32 folded BN2 shift
    # m_ref  : (9, 1, H*W)       f32 {0,1} per-tap validity masks (image border handling)
    # w3_ref : (Cout, Cmid)      bf16, BN3 scale folded
    # b3_ref : (Cout, 1)         f32 folded BN3 shift
    # o_ref  : (1, Cout, H*W)    f32 output block
    HW = H * W
    Cmid = w2_ref.shape[1]

    x = x_ref[0]                                                     # (Cin, HW) f32

    # ---- conv1 (1x1) + BN1 + ReLU : one MXU matmul, weights as lhs ----
    y1 = jnp.dot(w1_ref[...], x.astype(jnp.bfloat16),
                 preferred_element_type=jnp.float32)                 # (Cmid, HW)
    y1 = jnp.maximum(y1 + b1_ref[...], 0.0)

    # ---- conv2 (3x3, pad 1) + BN2 + ReLU : 9 accumulated dots, no staging ----
    # Each tap's shifted window is an in-register lane rotation of y1 (XLU slot, cheap);
    # out-of-image positions are zeroed with the precomputed per-tap masks.
    y2 = jnp.zeros((Cmid, HW), jnp.float32)
    for dh in (-1, 0, 1):
        for dw in (-1, 0, 1):
            t = (dh + 1) * 3 + (dw + 1)
            s = dh * W + dw                      # flat-index offset of the tap
            if s == 0:
                sh = y1
            else:
                sh = pltpu.roll(y1, shift=(-s) % HW, axis=1)         # sh[p] = y1[p + s]
                sh = sh * m_ref[t]                                   # zero invalid lanes
            y2 = y2 + jnp.dot(w2_ref[t], sh.astype(jnp.bfloat16),
                              preferred_element_type=jnp.float32)
    y2 = jnp.maximum(y2 + b2_ref[...], 0.0)

    # ---- conv3 (1x1) + BN3 + residual add (f32) ----
    y3 = jnp.dot(w3_ref[...], y2.astype(jnp.bfloat16),
                 preferred_element_type=jnp.float32)                 # (Cout, HW)
    o_ref[0] = y3 + b3_ref[...] + x


def bottleneck(x_nchw,
               w1, b1, g1, be1, m1, v1,
               w2, b2, g2, be2, m2, v2,
               w3, b3, g3, be3, m3, v3,
               eps=1e-5):
    """x_nchw: (N, Cin, H, W). conv weights in PyTorch OIHW layout, BN params per channel."""
    N, Cin, H, W = x_nchw.shape
    Cmid = w1.shape[0]
    Cout = w3.shape[0]
    assert Cout == Cin, "identity residual requires in_channels == out_channels"
    HW = H * W

    # Keep NCHW end-to-end. (N,C,H,W)->(N,C,H*W) is a metadata-only reshape (no HBM pass),
    # and for these small channel counts it puts the lane axis on H*W (lane-dense) instead
    # of 4-8 channels padded to 128 lanes. For C >= 128 prefer channels-on-lanes instead.
    x = x_nchw.reshape(N, Cin, HW).astype(jnp.float32)

    def scale_shift(gamma, beta, mean, var, conv_b):
        scale = gamma / jnp.sqrt(var + eps)
        shift = (beta + (conv_b - mean) * scale).reshape(-1, 1).astype(jnp.float32)
        return scale, shift

    # Fold BN scales into weight rows (out-channel dim) at prep time; cast weights to bf16.
    s1, b1s = scale_shift(g1, be1, m1, v1, b1)
    w1f = (w1.reshape(Cmid, Cin) * s1[:, None]).astype(jnp.bfloat16)           # (Cmid, Cin)

    s2, b2s = scale_shift(g2, be2, m2, v2, b2)
    w2taps = jnp.transpose(w2, (2, 3, 0, 1)).reshape(9, Cmid, Cmid)            # tap-major
    w2f = (w2taps * s2[None, :, None]).astype(jnp.bfloat16)                    # (9, Cmid, Cmid)

    s3, b3s = scale_shift(g3, be3, m3, v3, b3)
    w3f = (w3.reshape(Cout, Cmid) * s3[:, None]).astype(jnp.bfloat16)          # (Cout, Cmid)

    # Per-tap validity masks for the 3x3 conv (zero contribution outside the image),
    # computed once on the host — removes in-kernel iota/mod/compare work.
    hh, ww = np.meshgrid(np.arange(H), np.arange(W), indexing="ij")
    masks = np.zeros((9, 1, HW), np.float32)
    for dh in (-1, 0, 1):
        for dw in (-1, 0, 1):
            t = (dh + 1) * 3 + (dw + 1)
            valid = (hh + dh >= 0) & (hh + dh < H) & (ww + dw >= 0) & (ww + dw < W)
            masks[t, 0] = valid.reshape(-1).astype(np.float32)
    masks = jnp.asarray(masks)

    kernel = functools.partial(_bottleneck_kernel, H=H, W=W)

    out_flat = pl.pallas_call(
        kernel,
        out_shape=jax.ShapeDtypeStruct((N, Cout, HW), jnp.float32),
        grid=(N,),
        in_specs=[
            pl.BlockSpec((1, Cin, HW), lambda n: (n, 0, 0)),
            pl.BlockSpec((Cmid, Cin), lambda n: (0, 0)),
            pl.BlockSpec((Cmid, 1), lambda n: (0, 0)),
            pl.BlockSpec((9, Cmid, Cmid), lambda n: (0, 0, 0)),
            pl.BlockSpec((Cmid, 1), lambda n: (0, 0)),
            pl.BlockSpec((9, 1, HW), lambda n: (0, 0, 0)),
            pl.BlockSpec((Cout, Cmid), lambda n: (0, 0)),
            pl.BlockSpec((Cout, 1), lambda n: (0, 0)),
        ],
        out_specs=pl.BlockSpec((1, Cout, HW), lambda n: (n, 0, 0)),
        compiler_params=pltpu.CompilerParams(dimension_semantics=("parallel",)),
    )(x, w1f, b1s, w2f, b2s, masks, w3f, b3s)

    # Free view reshape back to NCHW.
    return out_flat.reshape(N, Cout, H, W)


def _reference(x,
               w1, b1, g1, be1, m1, v1,
               w2, b2, g2, be2, m2, v2,
               w3, b3, g3, be3, m3, v3,
               eps=1e-5):
    """Pure-JAX f32 reference (NCHW) matching the PyTorch forward in eval mode."""
    def conv(x, w, b, pad):
        y = jax.lax.conv_general_dilated(x, w, (1, 1), ((pad, pad), (pad, pad)),
                                         dimension_numbers=("NCHW", "OIHW", "NCHW"))
        return y + b[None, :, None, None]

    def bn(x, g, be, m, v):
        return (x - m[None, :, None, None]) / jnp.sqrt(v[None, :, None, None] + eps) \
               * g[None, :, None, None] + be[None, :, None, None]

    out = jnp.maximum(bn(conv(x, w1, b1, 0), g1, be1, m1, v1), 0.0)
    out = jnp.maximum(bn(conv(out, w2, b2, 1), g2, be2, m2, v2), 0.0)
    out = bn(conv(out, w3, b3, 0), g3, be3, m3, v3)
    return out + x


if __name__ == "__main__":
    key = jax.random.PRNGKey(0)
    N, Cin, Cmid, Cout, H, W = 2, 4, 8, 4, 16, 16   # residual add requires Cin == Cout

    ks = jax.random.split(key, 4)
    x = jax.random.normal(ks[0], (N, Cin, H, W), dtype=jnp.float32)

    def conv_bn_params(k, cin, cout, ksz):
        kk = jax.random.split(k, 6)
        w = 0.1 * jax.random.normal(kk[0], (cout, cin, ksz, ksz), dtype=jnp.float32)
        b = 0.1 * jax.random.normal(kk[1], (cout,), dtype=jnp.float32)
        g = 1.0 + 0.1 * jax.random.normal(kk[2], (cout,), dtype=jnp.float32)
        be = 0.1 * jax.random.normal(kk[3], (cout,), dtype=jnp.float32)
        m = 0.1 * jax.random.normal(kk[4], (cout,), dtype=jnp.float32)
        v = 1.0 + 0.1 * jax.random.uniform(kk[5], (cout,), dtype=jnp.float32)
        return w, b, g, be, m, v

    p1 = conv_bn_params(ks[1], Cin, Cmid, 1)   # conv1 1x1 + bn1
    p2 = conv_bn_params(ks[2], Cmid, Cmid, 3)  # conv2 3x3 + bn2
    p3 = conv_bn_params(ks[3], Cmid, Cout, 1)  # conv3 1x1 + bn3
    params = (*p1, *p2, *p3)

    out = jax.block_until_ready(bottleneck(x, *params))
    ref = jax.block_until_ready(_reference(x, *params))

    assert out.shape == (N, Cout, H, W)
    # bf16 MXU operands (f32 accumulation) -> slightly looser tolerance than pure f32.
    np.testing.assert_allclose(np.asarray(out), np.asarray(ref), rtol=3e-2, atol=3e-2)
    print("KERNEL_OK")
</pallas_src>

<mosaic_0001>
module attributes {stable_mosaic.version = 11 : i64} {
  func.func @_bottleneck_kernel(%arg0: i32, %arg1: memref<1x4x256xf32, #tpu.memory_space<vmem>>, %arg2: memref<8x4xbf16, #tpu.memory_space<vmem>>, %arg3: memref<8x1xf32, #tpu.memory_space<vmem>>, %arg4: memref<9x8x8xbf16, #tpu.memory_space<vmem>>, %arg5: memref<8x1xf32, #tpu.memory_space<vmem>>, %arg6: memref<9x1x256xf32, #tpu.memory_space<vmem>>, %arg7: memref<4x8xbf16, #tpu.memory_space<vmem>>, %arg8: memref<4x1xf32, #tpu.memory_space<vmem>>, %arg9: memref<1x4x256xf32, #tpu.memory_space<vmem>>) attributes {dimension_semantics = [#tpu.dimension_semantics<parallel>], iteration_bounds = array<i64: 2>, scalar_prefetch = 0 : i64, scratch_operands = 0 : i64, tpu.core_type = #tpu.core_type<tc>, window_params = [{transform_indices = @transform_0, window_bounds = array<i64: 1, 4, 256>}, {pipeline_mode = #tpu.pipeline_mode<synchronous>, transform_indices = @transform_1, window_bounds = array<i64: 8, 4>}, {pipeline_mode = #tpu.pipeline_mode<synchronous>, transform_indices = @transform_2, window_bounds = array<i64: 8, 1>}, {pipeline_mode = #tpu.pipeline_mode<synchronous>, transform_indices = @transform_3, window_bounds = array<i64: 9, 8, 8>}, {pipeline_mode = #tpu.pipeline_mode<synchronous>, transform_indices = @transform_4, window_bounds = array<i64: 8, 1>}, {pipeline_mode = #tpu.pipeline_mode<synchronous>, transform_indices = @transform_5, window_bounds = array<i64: 9, 1, 256>}, {pipeline_mode = #tpu.pipeline_mode<synchronous>, transform_indices = @transform_6, window_bounds = array<i64: 4, 8>}, {pipeline_mode = #tpu.pipeline_mode<synchronous>, transform_indices = @transform_7, window_bounds = array<i64: 4, 1>}, {transform_indices = @transform_8, window_bounds = array<i64: 1, 4, 256>}]} {
    %c0 = arith.constant 0 : index
    %c0_0 = arith.constant 0 : index
    %c0_1 = arith.constant 0 : index
    %0 = vector.load %arg1[%c0, %c0_0, %c0_1] : memref<1x4x256xf32, #tpu.memory_space<vmem>>, vector<1x4x256xf32>
    %1 = vector.shape_cast %0 : vector<1x4x256xf32> to vector<4x256xf32>
    %c0_2 = arith.constant 0 : index
    %c0_3 = arith.constant 0 : index
    %2 = vector.load %arg2[%c0_2, %c0_3] : memref<8x4xbf16, #tpu.memory_space<vmem>>, vector<8x4xbf16>
    %3 = arith.truncf %1 : vector<4x256xf32> to vector<4x256xbf16>
    %cst = arith.constant dense<0.000000e+00> : vector<8x256xf32>
    %4 = tpu.matmul %2, %3, %cst {dimension_numbers = #tpu.dot_dimension_numbers<[1], [0], [0], [1], [0, 0, 1, 1], [], []>} : vector<8x4xbf16>, vector<4x256xbf16>, vector<8x256xf32> -> vector<8x256xf32>
    %c0_4 = arith.constant 0 : index
    %c0_5 = arith.constant 0 : index
    %5 = vector.load %arg3[%c0_4, %c0_5] : memref<8x1xf32, #tpu.memory_space<vmem>>, vector<8x1xf32>
    %6 = vector.broadcast %5 : vector<8x1xf32> to vector<8x256xf32>
    %7 = arith.addf %4, %6 : vector<8x256xf32>
    %cst_6 = arith.constant 0.000000e+00 : f32
    %8 = vector.broadcast %cst_6 : f32 to vector<8x256xf32>
    %9 = arith.maximumf %7, %8 : vector<8x256xf32>
    %cst_7 = arith.constant 0.000000e+00 : f32
    %10 = vector.broadcast %cst_7 : f32 to vector<8x256xf32>
    %c17_i32 = arith.constant 17 : i32
    %11 = tpu.dynamic_rotate %9 by %c17_i32 dim 1 : vector<8x256xf32>, i32 -> vector<8x256xf32>
    %c0_8 = arith.constant 0 : index
    %c0_9 = arith.constant 0 : index
    %c0_10 = arith.constant 0 : index
    %12 = vector.load %arg6[%c0_8, %c0_9, %c0_10] : memref<9x1x256xf32, #tpu.memory_space<vmem>>, vector<1x1x256xf32>
    %13 = vector.shape_cast %12 : vector<1x1x256xf32> to vector<1x256xf32>
    %14 = vector.broadcast %13 : vector<1x256xf32> to vector<8x256xf32>
    %15 = arith.mulf %11, %14 : vector<8x256xf32>
    %c0_11 = arith.constant 0 : index
    %c0_12 = arith.constant 0 : index
    %c0_13 = arith.constant 0 : index
    %16 = vector.load %arg4[%c0_11, %c0_12, %c0_13] : memref<9x8x8xbf16, #tpu.memory_space<vmem>>, vector<1x8x8xbf16>
    %17 = vector.shape_cast %16 : vector<1x8x8xbf16> to vector<8x8xbf16>
    %18 = arith.truncf %15 : vector<8x256xf32> to vector<8x256xbf16>
    %cst_14 = arith.constant dense<0.000000e+00> : vector<8x256xf32>
    %19 = tpu.matmul %17, %18, %cst_14 {dimension_numbers = #tpu.dot_dimension_numbers<[1], [0], [0], [1], [0, 0, 1, 1], [], []>} : vector<8x8xbf16>, vector<8x256xbf16>, vector<8x256xf32> -> vector<8x256xf32>
    %20 = arith.addf %10, %19 : vector<8x256xf32>
    %c16_i32 = arith.constant 16 : i32
    %21 = tpu.dynamic_rotate %9 by %c16_i32 dim 1 : vector<8x256xf32>, i32 -> vector<8x256xf32>
    %c1 = arith.constant 1 : index
    %c0_15 = arith.constant 0 : index
    %c0_16 = arith.constant 0 : index
    %22 = vector.load %arg6[%c1, %c0_15, %c0_16] : memref<9x1x256xf32, #tpu.memory_space<vmem>>, vector<1x1x256xf32>
    %23 = vector.shape_cast %22 : vector<1x1x256xf32> to vector<1x256xf32>
    %24 = vector.broadcast %23 : vector<1x256xf32> to vector<8x256xf32>
    %25 = arith.mulf %21, %24 : vector<8x256xf32>
    %c1_17 = arith.constant 1 : index
    %c0_18 = arith.constant 0 : index
    %c0_19 = arith.constant 0 : index
    %26 = vector.load %arg4[%c1_17, %c0_18, %c0_19] : memref<9x8x8xbf16, #tpu.memory_space<vmem>>, vector<1x8x8xbf16>
    %27 = vector.shape_cast %26 : vector<1x8x8xbf16> to vector<8x8xbf16>
    %28 = arith.truncf %25 : vector<8x256xf32> to vector<8x256xbf16>
    %cst_20 = arith.constant dense<0.000000e+00> : vector<8x256xf32>
    %29 = tpu.matmul %27, %28, %cst_20 {dimension_numbers = #tpu.dot_dimension_numbers<[1], [0], [0], [1], [0, 0, 1, 1], [], []>} : vector<8x8xbf16>, vector<8x256xbf16>, vector<8x256xf32> -> vector<8x256xf32>
    %30 = arith.addf %20, %29 : vector<8x256xf32>
    %c15_i32 = arith.constant 15 : i32
    %31 = tpu.dynamic_rotate %9 by %c15_i32 dim 1 : vector<8x256xf32>, i32 -> vector<8x256xf32>
    %c2 = arith.constant 2 : index
    %c0_21 = arith.constant 0 : index
    %c0_22 = arith.constant 0 : index
    %32 = vector.load %arg6[%c2, %c0_21, %c0_22] : memref<9x1x256xf32, #tpu.memory_space<vmem>>, vector<1x1x256xf32>
    %33 = vector.shape_cast %32 : vector<1x1x256xf32> to vector<1x256xf32>
    %34 = vector.broadcast %33 : vector<1x256xf32> to vector<8x256xf32>
    %35 = arith.mulf %31, %34 : vector<8x256xf32>
    %c2_23 = arith.constant 2 : index
    %c0_24 = arith.constant 0 : index
    %c0_25 = arith.constant 0 : index
    %36 = vector.load %arg4[%c2_23, %c0_24, %c0_25] : memref<9x8x8xbf16, #tpu.memory_space<vmem>>, vector<1x8x8xbf16>
    %37 = vector.shape_cast %36 : vector<1x8x8xbf16> to vector<8x8xbf16>
    %38 = arith.truncf %35 : vector<8x256xf32> to vector<8x256xbf16>
    %cst_26 = arith.constant dense<0.000000e+00> : vector<8x256xf32>
    %39 = tpu.matmul %37, %38, %cst_26 {dimension_numbers = #tpu.dot_dimension_numbers<[1], [0], [0], [1], [0, 0, 1, 1], [], []>} : vector<8x8xbf16>, vector<8x256xbf16>, vector<8x256xf32> -> vector<8x256xf32>
    %40 = arith.addf %30, %39 : vector<8x256xf32>
    %c1_i32 = arith.constant 1 : i32
    %41 = tpu.dynamic_rotate %9 by %c1_i32 dim 1 : vector<8x256xf32>, i32 -> vector<8x256xf32>
    %c3 = arith.constant 3 : index
    %c0_27 = arith.constant 0 : index
    %c0_28 = arith.constant 0 : index
    %42 = vector.load %arg6[%c3, %c0_27, %c0_28] : memref<9x1x256xf32, #tpu.memory_space<vmem>>, vector<1x1x256xf32>
    %43 = vector.shape_cast %42 : vector<1x1x256xf32> to vector<1x256xf32>
    %44 = vector.broadcast %43 : vector<1x256xf32> to vector<8x256xf32>
    %45 = arith.mulf %41, %44 : vector<8x256xf32>
    %c3_29 = arith.constant 3 : index
    %c0_30 = arith.constant 0 : index
    %c0_31 = arith.constant 0 : index
    %46 = vector.load %arg4[%c3_29, %c0_30, %c0_31] : memref<9x8x8xbf16, #tpu.memory_space<vmem>>, vector<1x8x8xbf16>
    %47 = vector.shape_cast %46 : vector<1x8x8xbf16> to vector<8x8xbf16>
    %48 = arith.truncf %45 : vector<8x256xf32> to vector<8x256xbf16>
    %cst_32 = arith.constant dense<0.000000e+00> : vector<8x256xf32>
    %49 = tpu.matmul %47, %48, %cst_32 {dimension_numbers = #tpu.dot_dimension_numbers<[1], [0], [0], [1], [0, 0, 1, 1], [], []>} : vector<8x8xbf16>, vector<8x256xbf16>, vector<8x256xf32> -> vector<8x256xf32>
    %50 = arith.addf %40, %49 : vector<8x256xf32>
    %c4 = arith.constant 4 : index
    %c0_33 = arith.constant 0 : index
    %c0_34 = arith.constant 0 : index
    %51 = vector.load %arg4[%c4, %c0_33, %c0_34] : memref<9x8x8xbf16, #tpu.memory_space<vmem>>, vector<1x8x8xbf16>
    %52 = vector.shape_cast %51 : vector<1x8x8xbf16> to vector<8x8xbf16>
    %53 = arith.truncf %9 : vector<8x256xf32> to vector<8x256xbf16>
    %cst_35 = arith.constant dense<0.000000e+00> : vector<8x256xf32>
    %54 = tpu.matmul %52, %53, %cst_35 {dimension_numbers = #tpu.dot_dimension_numbers<[1], [0], [0], [1], [0, 0, 1, 1], [], []>} : vector<8x8xbf16>, vector<8x256xbf16>, vector<8x256xf32> -> vector<8x256xf32>
    %55 = arith.addf %50, %54 : vector<8x256xf32>
    %c255_i32 = arith.constant 255 : i32
    %56 = tpu.dynamic_rotate %9 by %c255_i32 dim 1 : vector<8x256xf32>, i32 -> vector<8x256xf32>
    %c5 = arith.constant 5 : index
    %c0_36 = arith.constant 0 : index
    %c0_37 = arith.constant 0 : index
    %57 = vector.load %arg6[%c5, %c0_36, %c0_37] : memref<9x1x256xf32, #tpu.memory_space<vmem>>, vector<1x1x256xf32>
    %58 = vector.shape_cast %57 : vector<1x1x256xf32> to vector<1x256xf32>
    %59 = vector.broadcast %58 : vector<1x256xf32> to vector<8x256xf32>
    %60 = arith.mulf %56, %59 : vector<8x256xf32>
    %c5_38 = arith.constant 5 : index
    %c0_39 = arith.constant 0 : index
    %c0_40 = arith.constant 0 : index
    %61 = vector.load %arg4[%c5_38, %c0_39, %c0_40] : memref<9x8x8xbf16, #tpu.memory_space<vmem>>, vector<1x8x8xbf16>
    %62 = vector.shape_cast %61 : vector<1x8x8xbf16> to vector<8x8xbf16>
    %63 = arith.truncf %60 : vector<8x256xf32> to vector<8x256xbf16>
    %cst_41 = arith.constant dense<0.000000e+00> : vector<8x256xf32>
    %64 = tpu.matmul %62, %63, %cst_41 {dimension_numbers = #tpu.dot_dimension_numbers<[1], [0], [0], [1], [0, 0, 1, 1], [], []>} : vector<8x8xbf16>, vector<8x256xbf16>, vector<8x256xf32> -> vector<8x256xf32>
    %65 = arith.addf %55, %64 : vector<8x256xf32>
    %c241_i32 = arith.constant 241 : i32
    %66 = tpu.dynamic_rotate %9 by %c241_i32 dim 1 : vector<8x256xf32>, i32 -> vector<8x256xf32>
    %c6 = arith.constant 6 : index
    %c0_42 = arith.constant 0 : index
    %c0_43 = arith.constant 0 : index
    %67 = vector.load %arg6[%c6, %c0_42, %c0_43] : memref<9x1x256xf32, #tpu.memory_space<vmem>>, vector<1x1x256xf32>
    %68 = vector.shape_cast %67 : vector<1x1x256xf32> to vector<1x256xf32>
    %69 = vector.broadcast %68 : vector<1x256xf32> to vector<8x256xf32>
    %70 = arith.mulf %66, %69 : vector<8x256xf32>
    %c6_44 = arith.constant 6 : index
    %c0_45 = arith.constant 0 : index
    %c0_46 = arith.constant 0 : index
    %71 = vector.load %arg4[%c6_44, %c0_45, %c0_46] : memref<9x8x8xbf16, #tpu.memory_space<vmem>>, vector<1x8x8xbf16>
    %72 = vector.shape_cast %71 : vector<1x8x8xbf16> to vector<8x8xbf16>
    %73 = arith.truncf %70 : vector<8x256xf32> to vector<8x256xbf16>
    %cst_47 = arith.constant dense<0.000000e+00> : vector<8x256xf32>
    %74 = tpu.matmul %72, %73, %cst_47 {dimension_numbers = #tpu.dot_dimension_numbers<[1], [0], [0], [1], [0, 0, 1, 1], [], []>} : vector<8x8xbf16>, vector<8x256xbf16>, vector<8x256xf32> -> vector<8x256xf32>
    %75 = arith.addf %65, %74 : vector<8x256xf32>
    %c240_i32 = arith.constant 240 : i32
    %76 = tpu.dynamic_rotate %9 by %c240_i32 dim 1 : vector<8x256xf32>, i32 -> vector<8x256xf32>
    %c7 = arith.constant 7 : index
    %c0_48 = arith.constant 0 : index
    %c0_49 = arith.constant 0 : index
    %77 = vector.load %arg6[%c7, %c0_48, %c0_49] : memref<9x1x256xf32, #tpu.memory_space<vmem>>, vector<1x1x256xf32>
    %78 = vector.shape_cast %77 : vector<1x1x256xf32> to vector<1x256xf32>
    %79 = vector.broadcast %78 : vector<1x256xf32> to vector<8x256xf32>
    %80 = arith.mulf %76, %79 : vector<8x256xf32>
    %c7_50 = arith.constant 7 : index
    %c0_51 = arith.constant 0 : index
    %c0_52 = arith.constant 0 : index
    %81 = vector.load %arg4[%c7_50, %c0_51, %c0_52] : memref<9x8x8xbf16, #tpu.memory_space<vmem>>, vector<1x8x8xbf16>
    %82 = vector.shape_cast %81 : vector<1x8x8xbf16> to vector<8x8xbf16>
    %83 = arith.truncf %80 : vector<8x256xf32> to vector<8x256xbf16>
    %cst_53 = arith.constant dense<0.000000e+00> : vector<8x256xf32>
    %84 = tpu.matmul %82, %83, %cst_53 {dimension_numbers = #tpu.dot_dimension_numbers<[1], [0], [0], [1], [0, 0, 1, 1], [], []>} : vector<8x8xbf16>, vector<8x256xbf16>, vector<8x256xf32> -> vector<8x256xf32>
    %85 = arith.addf %75, %84 : vector<8x256xf32>
    %c239_i32 = arith.constant 239 : i32
    %86 = tpu.dynamic_rotate %9 by %c239_i32 dim 1 : vector<8x256xf32>, i32 -> vector<8x256xf32>
    %c8 = arith.constant 8 : index
    %c0_54 = arith.constant 0 : index
    %c0_55 = arith.constant 0 : index
    %87 = vector.load %arg6[%c8, %c0_54, %c0_55] : memref<9x1x256xf32, #tpu.memory_space<vmem>>, vector<1x1x256xf32>
    %88 = vector.shape_cast %87 : vector<1x1x256xf32> to vector<1x256xf32>
    %89 = vector.broadcast %88 : vector<1x256xf32> to vector<8x256xf32>
    %90 = arith.mulf %86, %89 : vector<8x256xf32>
    %c8_56 = arith.constant 8 : index
    %c0_57 = arith.constant 0 : index
    %c0_58 = arith.constant 0 : index
    %91 = vector.load %arg4[%c8_56, %c0_57, %c0_58] : memref<9x8x8xbf16, #tpu.memory_space<vmem>>, vector<1x8x8xbf16>
    %92 = vector.shape_cast %91 : vector<1x8x8xbf16> to vector<8x8xbf16>
    %93 = arith.truncf %90 : vector<8x256xf32> to vector<8x256xbf16>
    %cst_59 = arith.constant dense<0.000000e+00> : vector<8x256xf32>
    %94 = tpu.matmul %92, %93, %cst_59 {dimension_numbers = #tpu.dot_dimension_numbers<[1], [0], [0], [1], [0, 0, 1, 1], [], []>} : vector<8x8xbf16>, vector<8x256xbf16>, vector<8x256xf32> -> vector<8x256xf32>
    %95 = arith.addf %85, %94 : vector<8x256xf32>
    %c0_60 = arith.constant 0 : index
    %c0_61 = arith.constant 0 : index
    %96 = vector.load %arg5[%c0_60, %c0_61] : memref<8x1xf32, #tpu.memory_space<vmem>>, vector<8x1xf32>
    %97 = vector.broadcast %96 : vector<8x1xf32> to vector<8x256xf32>
    %98 = arith.addf %95, %97 : vector<8x256xf32>
    %cst_62 = arith.constant 0.000000e+00 : f32
    %99 = vector.broadcast %cst_62 : f32 to vector<8x256xf32>
    %100 = arith.maximumf %98, %99 : vector<8x256xf32>
    %c0_63 = arith.constant 0 : index
    %c0_64 = arith.constant 0 : index
    %101 = vector.load %arg7[%c0_63, %c0_64] : memref<4x8xbf16, #tpu.memory_space<vmem>>, vector<4x8xbf16>
    %102 = arith.truncf %100 : vector<8x256xf32> to vector<8x256xbf16>
    %cst_65 = arith.constant dense<0.000000e+00> : vector<4x256xf32>
    %103 = tpu.matmul %101, %102, %cst_65 {dimension_numbers = #tpu.dot_dimension_numbers<[1], [0], [0], [1], [0, 0, 1, 1], [], []>} : vector<4x8xbf16>, vector<8x256xbf16>, vector<4x256xf32> -> vector<4x256xf32>
    %c0_66 = arith.constant 0 : index
    %c0_67 = arith.constant 0 : index
    %104 = vector.load %arg8[%c0_66, %c0_67] : memref<4x1xf32, #tpu.memory_space<vmem>>, vector<4x1xf32>
    %105 = vector.broadcast %104 : vector<4x1xf32> to vector<4x256xf32>
    %106 = arith.addf %103, %105 : vector<4x256xf32>
    %107 = arith.addf %106, %1 : vector<4x256xf32>
    %c0_68 = arith.constant 0 : index
    %c0_69 = arith.constant 0 : index
    %c0_70 = arith.constant 0 : index
    %108 = vector.load %arg9[%c0_68, %c0_69, %c0_70] : memref<1x4x256xf32, #tpu.memory_space<vmem>>, vector<1x4x256xf32>
    %109 = vector.shape_cast %108 : vector<1x4x256xf32> to vector<4x256xf32>
    %110 = vector.shape_cast %107 : vector<4x256xf32> to vector<1x4x256xf32>
    tpu.vector_store %arg9[%c0_68, %c0_69, %c0_70], %110 {strides = array<i32>} : memref<1x4x256xf32, #tpu.memory_space<vmem>>, vector<1x4x256xf32>,
    return
  }
  func.func @transform_0(%arg0: i32) -> (i32, i32, i32) {
    %c0_i32 = arith.constant 0 : i32
    %c0_i32_0 = arith.constant 0 : i32
    %c0_i32_1 = arith.constant 0 : i32
    return %arg0, %c0_i32, %c0_i32_0 : i32, i32, i32
  }
  func.func @transform_1(%arg0: i32) -> (i32, i32) {
    %c0_i32 = arith.constant 0 : i32
    %c0_i32_0 = arith.constant 0 : i32
    %c0_i32_1 = arith.constant 0 : i32
    return %c0_i32, %c0_i32_0 : i32, i32
  }
  func.func @transform_2(%arg0: i32) -> (i32, i32) {
    %c0_i32 = arith.constant 0 : i32
    %c0_i32_0 = arith.constant 0 : i32
    %c0_i32_1 = arith.constant 0 : i32
    return %c0_i32, %c0_i32_0 : i32, i32
  }
  func.func @transform_3(%arg0: i32) -> (i32, i32, i32) {
    %c0_i32 = arith.constant 0 : i32
    %c0_i32_0 = arith.constant 0 : i32
    %c0_i32_1 = arith.constant 0 : i32
    %c0_i32_2 = arith.constant 0 : i32
    return %c0_i32, %c0_i32_0, %c0_i32_1 : i32, i32, i32
  }
  func.func @transform_4(%arg0: i32) -> (i32, i32) {
    %c0_i32 = arith.constant 0 : i32
    %c0_i32_0 = arith.constant 0 : i32
    %c0_i32_1 = arith.constant 0 : i32
    return %c0_i32, %c0_i32_0 : i32, i32
  }
  func.func @transform_5(%arg0: i32) -> (i32, i32, i32) {
    %c0_i32 = arith.constant 0 : i32
    %c0_i32_0 = arith.constant 0 : i32
    %c0_i32_1 = arith.constant 0 : i32
    %c0_i32_2 = arith.constant 0 : i32
    return %c0_i32, %c0_i32_0, %c0_i32_1 : i32, i32, i32
  }
  func.func @transform_6(%arg0: i32) -> (i32, i32) {
    %c0_i32 = arith.constant 0 : i32
    %c0_i32_0 = arith.constant 0 : i32
    %c0_i32_1 = arith.constant 0 : i32
    return %c0_i32, %c0_i32_0 : i32, i32
  }
  func.func @transform_7(%arg0: i32) -> (i32, i32) {
    %c0_i32 = arith.constant 0 : i32
    %c0_i32_0 = arith.constant 0 : i32
    %c0_i32_1 = arith.constant 0 : i32
    return %c0_i32, %c0_i32_0 : i32, i32
  }
  func.func @transform_8(%arg0: i32) -> (i32, i32, i32) {
    %c0_i32 = arith.constant 0 : i32
    %c0_i32_0 = arith.constant 0 : i32
    %c0_i32_1 = arith.constant 0 : i32
    return %arg0, %c0_i32, %c0_i32_0 : i32, i32, i32
  }
}

</mosaic_0001>

<llo_original>
// kernel: tpu_custom_call.1
$region0: #{tpu_custom_call.1}
  #allocation0 [shape = 'u32[]', space=smem, size = 0x4, offset = 0x4, fixed_abs, tag = 'smem constant byte address 0x4 - core index']
  #allocation1 [shape = 'u32[72,128]{1,0:T(1,128)}', space=vmem, size = 0x9000, scoped, tag = 'internal scratch']
  %s0 = inlined_call_operand.vmem [shape: f32[2,4,256], index: 0, kind: input, shape index: {}]
  %s1 = inlined_call_operand.vmem [shape: bf16[8,4], index: 1, kind: input, shape index: {}]
  %s2 = inlined_call_operand.vmem [shape: f32[8,1], index: 2, kind: input, shape index: {}]
  %s3 = inlined_call_operand.vmem [shape: bf16[9,8,8], index: 3, kind: input, shape index: {}]
  %s4 = inlined_call_operand.vmem [shape: f32[8,1], index: 4, kind: input, shape index: {}]
  %s5 = inlined_call_operand.vmem [shape: f32[9,1,256], index: 5, kind: input, shape index: {}]
  %s6 = inlined_call_operand.vmem [shape: bf16[4,8], index: 6, kind: input, shape index: {}]
  %s7 = inlined_call_operand.vmem [shape: f32[4,1], index: 7, kind: input, shape index: {}]
  %s8 = inlined_call_operand.hbm [shape: f32[2,4,256], index: 8, kind: output, shape index: {}]
  %s9 = sld [smem:[#allocation0]]
  $region65: #{tpu_custom_call.1} parent=0
    _
  %s11 = ssub.s32 1, %s9
  %s12 = scalar_select 0, %s11, %s9
  $region1: #{tpu_custom_call.1} parent=0
    #allocation2 [shape = 'u8[8192]{0}', space=vmem, size = 0x2000, scoped, tag = 'output window, operand 0']
    #allocation3 [shape = 's32[2]{0}', space=sflag, size = 0x8, scoped, tag = 'scoped memory for tpu_custom_call.1']
    %13 = vsyncpa [#allocation3], 0
    %s14 = scalar_lea.sflag [#allocation3], 1
    %15 = vsyncpa %s14, 0
    loop: start=0, step=1, limit=4
    $region2: #{tpu_custom_call.1} parent=1 // loop_pre_header
      _
    $region3: #{tpu_custom_call.1} parent=1 // loop_header
      %s17 = sphi 0, %s21
      %p18 = scmp.ge.s32.totalorder %s17, 4
      %s27 = sphi 0, %s29
      %s30 = sphi 0, %s27
      %s31 = sphi 0, %s30
      %s47 = sphi 0, %s31
      %s51 = sphi 0, %s51
      %s53 = sphi 0, %s51
      %s54 = sphi 0, %s53
      %s68 = sphi 0, %s54
      %s72 = sphi 0, %s72
      %s74 = sphi 0, %s72
      %s75 = sphi 0, %s74
      %s89 = sphi 0, %s75
      %s93 = sphi 0, %s93
      %s95 = sphi 0, %s93
      %s96 = sphi 0, %s95
      %s110 = sphi 0, %s96
      %s114 = sphi 0, %s114
      %s116 = sphi 0, %s114
      %s117 = sphi 0, %s116
      %s131 = sphi 0, %s117
      %s135 = sphi 0, %s135
      %s137 = sphi 0, %s135
      %s138 = sphi 0, %s137
      %s152 = sphi 0, %s138
      %s156 = sphi 0, %s156
      %s158 = sphi 0, %s156
      %s159 = sphi 0, %s158
      %s173 = sphi 0, %s159
      %s177 = sphi 0, %s177
      %s179 = sphi 0, %s177
      %s180 = sphi 0, %s179
      %s194 = sphi 0, %s180
      %s200 = sphi 0, %s202
      %s203 = sphi 0, %s200
      %s204 = sphi 0, %s203
      %s220 = sphi 0, %s204
    $region4: #{tpu_custom_call.1} parent=1 // loop_header_branch
      %20 = sbr.rel (%p18) target = $region8
    $region5: #{tpu_custom_call.1} parent=1 // loop_body
      %s22 = ssub.s32 %s17, 1
      %s23 = ssub.s32 %s17, 2
      %s24 = sadd.s32 %s17, 1
      %s25 = ssub.s32 %s17, %s24
      %p26 = scmp.eq.s32.totalorder %s25, 0
      %s28 = sadd.s32 %s27, 1
      %s29 = scalar_select %p26, %s27, %s28
      %p32 = pneg %p26
      %p33 = scmp.eq.s32.totalorder %s17, 1
      %p34 = por %p32, %p33
      %p35 = scmp.ne.s32.totalorder %s27, %s30
      %p36 = scmp.eq.s32.totalorder %s17, 0
      %p37 = por %p35, %p36
      %p38 = scmp.ne.s32.totalorder %s27, %s30
      %p39 = scmp.eq.s32.totalorder %s22, 1
      %p40 = por %p38, %p39
      %p41 = scmp.ne.s32.totalorder %s30, %s31
      %p42 = scmp.eq.s32.totalorder %s22, 0
      %p43 = por %p41, %p42
      %p44 = scmp.ne.s32.totalorder %s30, %s31
      %p45 = scmp.eq.s32.totalorder %s23, 1
      %p46 = por %p44, %p45
      %p48 = scmp.ne.s32.totalorder %s31, %s47
      %p49 = scmp.eq.s32.totalorder %s23, 0
      %p50 = por %p48, %p49
      %s52 = sadd.s32 %s51, 1
      %p55 = scmp.eq.s32.totalorder %s17, 1
      %p56 = scmp.ne.s32.totalorder %s51, %s53
      %p57 = scmp.eq.s32.totalorder %s17, 0
      %p58 = por %p56, %p57
      %p59 = scmp.ne.s32.totalorder %s51, %s53
      %p60 = scmp.eq.s32.totalorder %s22, 1
      %p61 = por %p59, %p60
      %p62 = scmp.ne.s32.totalorder %s53, %s54
      %p63 = scmp.eq.s32.totalorder %s22, 0
      %p64 = por %p62, %p63
      %p65 = scmp.ne.s32.totalorder %s53, %s54
      %p66 = scmp.eq.s32.totalorder %s23, 1
      %p67 = por %p65, %p66
      %p69 = scmp.ne.s32.totalorder %s54, %s68
      %p70 = scmp.eq.s32.totalorder %s23, 0
      %p71 = por %p69, %p70
      %s73 = sadd.s32 %s72, 1
      %p76 = scmp.eq.s32.totalorder %s17, 1
      %p77 = scmp.ne.s32.totalorder %s72, %s74
      %p78 = scmp.eq.s32.totalorder %s17, 0
      %p79 = por %p77, %p78
      %p80 = scmp.ne.s32.totalorder %s72, %s74
      %p81 = scmp.eq.s32.totalorder %s22, 1
      %p82 = por %p80, %p81
      %p83 = scmp.ne.s32.totalorder %s74, %s75
      %p84 = scmp.eq.s32.totalorder %s22, 0
      %p85 = por %p83, %p84
      %p86 = scmp.ne.s32.totalorder %s74, %s75
      %p87 = scmp.eq.s32.totalorder %s23, 1
      %p88 = por %p86, %p87
      %p90 = scmp.ne.s32.totalorder %s75, %s89
      %p91 = scmp.eq.s32.totalorder %s23, 0
      %p92 = por %p90, %p91
      %s94 = sadd.s32 %s93, 1
      %p97 = scmp.eq.s32.totalorder %s17, 1
      %p98 = scmp.ne.s32.totalorder %s93, %s95
      %p99 = scmp.eq.s32.totalorder %s17, 0
      %p100 = por %p98, %p99
      %p101 = scmp.ne.s32.totalorder %s93, %s95
      %p102 = scmp.eq.s32.totalorder %s22, 1
      %p103 = por %p101, %p102
      %p104 = scmp.ne.s32.totalorder %s95, %s96
      %p105 = scmp.eq.s32.totalorder %s22, 0
      %p106 = por %p104, %p105
      %p107 = scmp.ne.s32.totalorder %s95, %s96
      %p108 = scmp.eq.s32.totalorder %s23, 1
      %p109 = por %p107, %p108
      %p111 = scmp.ne.s32.totalorder %s96, %s110
      %p112 = scmp.eq.s32.totalorder %s23, 0
      %p113 = por %p111, %p112
      %s115 = sadd.s32 %s114, 1
      %p118 = scmp.eq.s32.totalorder %s17, 1
      %p119 = scmp.ne.s32.totalorder %s114, %s116
      %p120 = scmp.eq.s32.totalorder %s17, 0
      %p121 = por %p119, %p120
      %p122 = scmp.ne.s32.totalorder %s114, %s116
      %p123 = scmp.eq.s32.totalorder %s22, 1
      %p124 = por %p122, %p123
      %p125 = scmp.ne.s32.totalorder %s116, %s117
      %p126 = scmp.eq.s32.totalorder %s22, 0
      %p127 = por %p125, %p126
      %p128 = scmp.ne.s32.totalorder %s116, %s117
      %p129 = scmp.eq.s32.totalorder %s23, 1
      %p130 = por %p128, %p129
      %p132 = scmp.ne.s32.totalorder %s117, %s131
      %p133 = scmp.eq.s32.totalorder %s23, 0
      %p134 = por %p132, %p133
      %s136 = sadd.s32 %s135, 1
      %p139 = scmp.eq.s32.totalorder %s17, 1
      %p140 = scmp.ne.s32.totalorder %s135, %s137
      %p141 = scmp.eq.s32.totalorder %s17, 0
      %p142 = por %p140, %p141
      %p143 = scmp.ne.s32.totalorder %s135, %s137
      %p144 = scmp.eq.s32.totalorder %s22, 1
      %p145 = por %p143, %p144
      %p146 = scmp.ne.s32.totalorder %s137, %s138
      %p147 = scmp.eq.s32.totalorder %s22, 0
      %p148 = por %p146, %p147
      %p149 = scmp.ne.s32.totalorder %s137, %s138
      %p150 = scmp.eq.s32.totalorder %s23, 1
      %p151 = por %p149, %p150
      %p153 = scmp.ne.s32.totalorder %s138, %s152
      %p154 = scmp.eq.s32.totalorder %s23, 0
      %p155 = por %p153, %p154
      %s157 = sadd.s32 %s156, 1
      %p160 = scmp.eq.s32.totalorder %s17, 1
      %p161 = scmp.ne.s32.totalorder %s156, %s158
      %p162 = scmp.eq.s32.totalorder %s17, 0
      %p163 = por %p161, %p162
      %p164 = scmp.ne.s32.totalorder %s156, %s158
      %p165 = scmp.eq.s32.totalorder %s22, 1
      %p166 = por %p164, %p165
      %p167 = scmp.ne.s32.totalorder %s158, %s159
      %p168 = scmp.eq.s32.totalorder %s22, 0
      %p169 = por %p167, %p168
      %p170 = scmp.ne.s32.totalorder %s158, %s159
      %p171 = scmp.eq.s32.totalorder %s23, 1
      %p172 = por %p170, %p171
      %p174 = scmp.ne.s32.totalorder %s159, %s173
      %p175 = scmp.eq.s32.totalorder %s23, 0
      %p176 = por %p174, %p175
      %s178 = sadd.s32 %s177, 1
      %p181 = scmp.eq.s32.totalorder %s17, 1
      %p182 = scmp.ne.s32.totalorder %s177, %s179
      %p183 = scmp.eq.s32.totalorder %s17, 0
      %p184 = por %p182, %p183
      %p185 = scmp.ne.s32.totalorder %s177, %s179
      %p186 = scmp.eq.s32.totalorder %s22, 1
      %p187 = por %p185, %p186
      %p188 = scmp.ne.s32.totalorder %s179, %s180
      %p189 = scmp.eq.s32.totalorder %s22, 0
      %p190 = por %p188, %p189
      %p191 = scmp.ne.s32.totalorder %s179, %s180
      %p192 = scmp.eq.s32.totalorder %s23, 1
      %p193 = por %p191, %p192
      %p195 = scmp.ne.s32.totalorder %s180, %s194
      %p196 = scmp.eq.s32.totalorder %s23, 0
      %p197 = por %p195, %p196
      %s198 = ssub.s32 %s17, %s24
      %p199 = scmp.eq.s32.totalorder %s198, 0
      %s201 = sadd.s32 %s200, 1
      %s202 = scalar_select %p199, %s200, %s201
      %p205 = pneg %p199
      %p206 = scmp.eq.s32.totalorder %s17, 1
      %p207 = por %p205, %p206
      %p208 = scmp.ne.s32.totalorder %s200, %s203
      %p209 = scmp.eq.s32.totalorder %s17, 0
      %p210 = por %p208, %p209
      %p211 = scmp.ne.s32.totalorder %s200, %s203
      %p212 = scmp.eq.s32.totalorder %s22, 1
      %p213 = por %p211, %p212
      %p214 = scmp.ne.s32.totalorder %s203, %s204
      %p215 = scmp.eq.s32.totalorder %s22, 0
      %p216 = por %p214, %p215
      %p217 = scmp.ne.s32.totalorder %s203, %s204
      %p218 = scmp.eq.s32.totalorder %s23, 1
      %p219 = por %p217, %p218
      %p221 = scmp.ne.s32.totalorder %s204, %s220
      %p222 = scmp.eq.s32.totalorder %s23, 0
      %p223 = por %p221, %p222
      %p224 = scmp.le.s32.totalorder 1, %s17
      %p225 = scmp.lt.s32.totalorder %s17, 3
      %p226 = pnand %p224, %p225
      %p227 = pneg %p226
      // Predicated region
      $region9: #{tpu_custom_call.1} parent=5 // pred_check
        _
      $region10: #{tpu_custom_call.1} parent=5 // pred_check_branch
        %229 = sbr.rel (%p226) target = $region12
      $region11: #{tpu_custom_call.1} parent=5 // pred_region
        %s230 = ssub.s32 %s17, 1
        // Predicated region
        $region13: #{tpu_custom_call.1} parent=11 // pred_check
          %p231 = pneg %p64
        $region14: #{tpu_custom_call.1} parent=11 // pred_check_branch
          %233 = sbr.rel (%p231) target = $region16
        $region15: #{tpu_custom_call.1} parent=11 // pred_region
          _
        $region16: #{tpu_custom_call.1} parent=11 // pred_fallthru
          _
        // Predicated region
        $region17: #{tpu_custom_call.1} parent=11 // pred_check
          %p234 = pneg %p85
        $region18: #{tpu_custom_call.1} parent=11 // pred_check_branch
          %236 = sbr.rel (%p234) target = $region20
        $region19: #{tpu_custom_call.1} parent=11 // pred_region
          _
        $region20: #{tpu_custom_call.1} parent=11 // pred_fallthru
          _
        // Predicated region
        $region21: #{tpu_custom_call.1} parent=11 // pred_check
          %p237 = pneg %p106
        $region22: #{tpu_custom_call.1} parent=11 // pred_check_branch
          %239 = sbr.rel (%p237) target = $region24
        $region23: #{tpu_custom_call.1} parent=11 // pred_region
          _
        $region24: #{tpu_custom_call.1} parent=11 // pred_fallthru
          _
        // Predicated region
        $region25: #{tpu_custom_call.1} parent=11 // pred_check
          %p240 = pneg %p127
        $region26: #{tpu_custom_call.1} parent=11 // pred_check_branch
          %242 = sbr.rel (%p240) target = $region28
        $region27: #{tpu_custom_call.1} parent=11 // pred_region
          _
        $region28: #{tpu_custom_call.1} parent=11 // pred_fallthru
          _
        // Predicated region
        $region29: #{tpu_custom_call.1} parent=11 // pred_check
          %p243 = pneg %p148
        $region30: #{tpu_custom_call.1} parent=11 // pred_check_branch
          %245 = sbr.rel (%p243) target = $region32
        $region31: #{tpu_custom_call.1} parent=11 // pred_region
          _
        $region32: #{tpu_custom_call.1} parent=11 // pred_fallthru
          _
        // Predicated region
        $region33: #{tpu_custom_call.1} parent=11 // pred_check
          %p246 = pneg %p169
        $region34: #{tpu_custom_call.1} parent=11 // pred_check_branch
          %248 = sbr.rel (%p246) target = $region36
        $region35: #{tpu_custom_call.1} parent=11 // pred_region
          _
        $region36: #{tpu_custom_call.1} parent=11 // pred_fallthru
          _
        // Predicated region
        $region37: #{tpu_custom_call.1} parent=11 // pred_check
          %p249 = pneg %p190
        $region38: #{tpu_custom_call.1} parent=11 // pred_check_branch
          %251 = sbr.rel (%p249) target = $region40
        $region39: #{tpu_custom_call.1} parent=11 // pred_region
          _
        $region40: #{tpu_custom_call.1} parent=11 // pred_fallthru
          _
      $region12: #{tpu_custom_call.1} parent=5 // pred_fallthru
        _
      %p252 = scmp.lt.s32.totalorder %s17, 2
      // Predicated region
      $region41: #{tpu_custom_call.1} parent=5 // pred_check
        %p253 = pneg %p252
      $region42: #{tpu_custom_call.1} parent=5 // pred_check_branch
        %255 = sbr.rel (%p253) target = $region44
      $region43: #{tpu_custom_call.1} parent=5 // pred_region
        // Predicated region
        $region45: #{tpu_custom_call.1} parent=43 // pred_check
          %p256 = pneg %p37
        $region46: #{tpu_custom_call.1} parent=43 // pred_check_branch
          %258 = sbr.rel (%p256) target = $region48
        $region47: #{tpu_custom_call.1} parent=43 // pred_region
          %p259 = scmp.lt.s32.totalorder %s17, 1
          %s260 = scalar_select %p259, %s17, 1
          %s261 = smul.addr %s260, 2
          %s262 = smul.addr %s261, 4
          %s263 = scalar_lea.vmem %s0, %s262
        $region48: #{tpu_custom_call.1} parent=43 // pred_fallthru
          _
      $region44: #{tpu_custom_call.1} parent=5 // pred_fallthru
        _
      %p264 = scmp.le.s32.totalorder 1, %s17
      %p265 = scmp.lt.s32.totalorder %s17, 3
      %p266 = pnand %p264, %p265
      %p267 = pneg %p266
      // Predicated region
      $region49: #{tpu_custom_call.1} parent=5 // pred_check
        _
      $region50: #{tpu_custom_call.1} parent=5 // pred_check_branch
        %269 = sbr.rel (%p266) target = $region52
      $region51: #{tpu_custom_call.1} parent=5 // pred_region
        %s270 = ssub.s32 %s17, 1
        %p271 = scmp.lt.s32.totalorder %s22, 1
        %s272 = scalar_select %p271, %s22, 1
        %s273 = smul.addr %s272, 2
        %s274 = smul.addr %s273, 4
        %s275 = scalar_lea.vmem %s0, %s274
        %p276 = pneg %p43
        %p277 = pneg %p40
        %p278 = pneg %p64
        %p279 = pneg %p61
        %p280 = pneg %p85
        %p281 = pneg %p82
        %p282 = pneg %p106
        %p283 = pneg %p103
        %p284 = pneg %p127
        %p285 = pneg %p124
        %p286 = pneg %p148
        %p287 = pneg %p145
        %p288 = pneg %p169
        %p289 = pneg %p166
        %p290 = pneg %p190
        %p291 = pneg %p187
        %p292 = pneg %p216
        %p293 = pneg %p213
        %s294 = sand.u32 %s203, 1
        %s295 = scalar_lea.sflag [#allocation3], %s294
        %s296 = sand.u32 %s203, 1
        %s297 = smul.addr %s296, 8
        %s298 = scalar_lea.vmem [#allocation2], %s297
        %p299 = scmp.lt.s32.totalorder %s22, 1
        %s300 = scalar_select %p299, %s22, 1
        %s301 = smul.addr %s300, 2
        %s302 = smul.addr %s301, 4
        %s303 = scalar_lea.vmem %s0, %s302
        %v305 = vld [vmem:[%s303] sm:$0xff]
        %v306 = vld [vmem:[%s1] sm:$0xf]
        %308 = vst [vmem:[#allocation1] ss:$2 sm:$0xff] %v305
        %v309 = vld.sshfl [vmem:[#allocation1] sm:$0xff pattern:$0x75316420]
        %v310 = vld.sshfl [vmem:[#allocation1 + $0x8] sm:$0xff pattern:$0x75316420]
        %v313 = vpack.c.bf16 %v309, %v309
        %v314 = vpack.c.bf16 %v310, %v310
        %v315 = vld [vmem:[%s2] sm:$0xff]
        %317 = vset.pattern.permute.xlu0 0
        %318 = vperm.xlu0 %317, %v315
        %v319 = vpop.permute.xlu0 %318
        %vm321 = vcmask 31744
        %v323 = vsel %vm321, %v306, 0
        %vm325 = vcmask 1041408
        %v327 = vsel %vm325, %v313, 0
        %v330 = vsel %vm325, %v314, 0
        %332 = vmatpush.bf16.msra.mxu0 0
        %333 = vmatpush.bf16.msra.mxu0 0
        %334 = vmatpush.bf16.msra.mxu0 0
        %335 = vmatpush.bf16.msra.mxu0 0
        %336 = vmatpush.bf16.msra.mxu0 0
        %337 = vmatpush.bf16.msra.mxu0 0
        %338 = vmatpush.bf16.msra.mxu0 0
        %339 = vmatpush.bf16.msra.mxu0 %v327
        %340 = vmatmul.bf16.gmra.mxu0 %v323
        %v341 = vpop.f32.mrf.mxu0
        %v342 = vadd.f32 %v319, %v341
        %v343 = vpop.f32.mrf.mxu0
        %344 = vdwg.mxu0
        %345 = vmatpush.bf16.msra.mxu0 0
        %346 = vmatpush.bf16.msra.mxu0 0
        %347 = vmatpush.bf16.msra.mxu0 0
        %348 = vmatpush.bf16.msra.mxu0 0
        %349 = vmatpush.bf16.msra.mxu0 0
        %350 = vmatpush.bf16.msra.mxu0 0
        %351 = vmatpush.bf16.msra.mxu0 0
        %352 = vmatpush.bf16.msra.mxu0 %v330
        %353 = vmatmul.bf16.gmra.mxu0 %v323
        %v354 = vpop.f32.mrf.mxu0
        %v355 = vadd.f32 %v319, %v354
        %v356 = vpop.f32.mrf.mxu0
        %357 = vdwg.mxu0
        %v358 = vmax.f32 %v342, 0.0
        %v359 = vmax.f32 %v355, 0.0
        %360 = vrot.lane.b32.xlu0 %v358, 17
        %v361 = vpop.permute.xlu0 %360
        %362 = vrot.lane.b32.xlu0 %v359, 17
        %v363 = vpop.permute.xlu0 %362
        %v364 = vlaneseq
        %v365 = vand.u32 %v364, 127
        %vm366 = vcmp.lt.s32.totalorder %v365, 17
        %v367 = vsel %vm366, %v361, %v363
        %v368 = vsel %vm366, %v363, %v361
        %v369 = vld [vmem:[%s5] sm:$0x3]
        %v371 = vperm.slane %v369, 0
        %v372 = vperm.slane %v369, 1
        %v375 = vmul.f32 %v368, %v371
        %v376 = vmul.f32 %v367, %v372
        %v377 = vld [vmem:[%s3] sm:$0xf]
        %v378 = vpack.c.bf16 %v375, %v375
        %v379 = vpack.c.bf16 %v376, %v376
        %380 = vrot.lane.b32.xlu0 %v358, 16
        %v381 = vpop.permute.xlu0 %380
        %382 = vrot.lane.b32.xlu0 %v359, 16
        %v383 = vpop.permute.xlu0 %382
        %vm384 = vcmp.lt.s32.totalorder %v365, 16
        %v385 = vsel %vm384, %v381, %v383
        %v386 = vsel %vm384, %v383, %v381
        %s387 = scalar_lea.vmem %s5, 2
        %v388 = vld [vmem:[%s387] sm:$0x3]
        %v390 = vperm.slane %v388, 0
        %v391 = vperm.slane %v388, 1
        %v394 = vmul.f32 %v386, %v390
        %v395 = vmul.f32 %v385, %v391
        %s396 = scalar_lea.vmem %s3, 4
        %v397 = vld [vmem:[%s396] sm:$0xf]
        %v398 = vpack.c.bf16 %v394, %v394
        %v399 = vpack.c.bf16 %v395, %v395
        %vm400 = vcmask 64512
        %v402 = vsel %vm400, %v397, 0
        %vm404 = vcmask 1043456
        %v406 = vsel %vm404, %v398, 0
        %v409 = vsel %vm404, %v399, 0
        %411 = vmatpush.bf16.msra.mxu0 0
        %412 = vmatpush.bf16.msra.mxu0 0
        %413 = vmatpush.bf16.msra.mxu0 0
        %414 = vmatpush.bf16.msra.mxu0 0
        %415 = vmatpush.bf16.msra.mxu0 0
        %416 = vmatpush.bf16.msra.mxu0 0
        %417 = vmatpush.bf16.msra.mxu0 0
        %418 = vmatpush.bf16.msra.mxu0 %v406
        %419 = vmatmul.bf16.gmra.mxu0 %v402
        %v420 = vpop.f32.mrf.mxu0
        %v421 = vadd.f32 0.0, %v420
        %v422 = vpop.f32.mrf.mxu0
        %423 = vdwg.mxu0
        %424 = vmatpush.bf16.msra.mxu0 0
        %425 = vmatpush.bf16.msra.mxu0 0
        %426 = vmatpush.bf16.msra.mxu0 0
        %427 = vmatpush.bf16.msra.mxu0 0
        %428 = vmatpush.bf16.msra.mxu0 0
        %429 = vmatpush.bf16.msra.mxu0 0
        %430 = vmatpush.bf16.msra.mxu0 0
        %431 = vmatpush.bf16.msra.mxu0 %v409
        %432 = vmatmul.bf16.gmra.mxu0 %v402
        %v433 = vpop.f32.mrf.mxu0
        %v434 = vadd.f32 0.0, %v433
        %v435 = vpop.f32.mrf.mxu0
        %436 = vdwg.mxu0
        %v438 = vsel %vm400, %v377, 0
        %v441 = vsel %vm404, %v378, 0
        %v444 = vsel %vm404, %v379, 0
        %446 = vmatpush.bf16.msra.mxu0 0
        %447 = vmatpush.bf16.msra.mxu0 0
        %448 = vmatpush.bf16.msra.mxu0 0
        %449 = vmatpush.bf16.msra.mxu0 0
        %450 = vmatpush.bf16.msra.mxu0 0
        %451 = vmatpush.bf16.msra.mxu0 0
        %452 = vmatpush.bf16.msra.mxu0 0
        %453 = vmatpush.bf16.msra.mxu0 %v441
        %454 = vmatmul.bf16.gmra.mxu0 %v438
        %v455 = vpop.f32.mrf.mxu0
        %v456 = vadd.f32 %v421, %v455
        %v457 = vpop.f32.mrf.mxu0
        %458 = vdwg.mxu0
        %459 = vmatpush.bf16.msra.mxu0 0
        %460 = vmatpush.bf16.msra.mxu0 0
        %461 = vmatpush.bf16.msra.mxu0 0
        %462 = vmatpush.bf16.msra.mxu0 0
        %463 = vmatpush.bf16.msra.mxu0 0
        %464 = vmatpush.bf16.msra.mxu0 0
        %465 = vmatpush.bf16.msra.mxu0 0
        %466 = vmatpush.bf16.msra.mxu0 %v444
        %467 = vmatmul.bf16.gmra.mxu0 %v438
        %v468 = vpop.f32.mrf.mxu0
        %v469 = vadd.f32 %v434, %v468
        %v470 = vpop.f32.mrf.mxu0
        %471 = vdwg.mxu0
        %472 = vrot.lane.b32.xlu0 %v358, 15
        %v473 = vpop.permute.xlu0 %472
        %474 = vrot.lane.b32.xlu0 %v359, 15
        %v475 = vpop.permute.xlu0 %474
        %vm476 = vcmp.lt.s32.totalorder %v365, 15
        %v477 = vsel %vm476, %v473, %v475
        %v478 = vsel %vm476, %v475, %v473
        %s479 = scalar_lea.vmem %s5, 4
        %v480 = vld [vmem:[%s479] sm:$0x3]
        %v482 = vperm.slane %v480, 0
        %v483 = vperm.slane %v480, 1
        %v486 = vmul.f32 %v478, %v482
        %v487 = vmul.f32 %v477, %v483
        %s488 = scalar_lea.vmem %s3, 8
        %v489 = vld [vmem:[%s488] sm:$0xf]
        %v490 = vpack.c.bf16 %v486, %v486
        %v491 = vpack.c.bf16 %v487, %v487
        %v493 = vsel %vm400, %v489, 0
        %v496 = vsel %vm404, %v490, 0
        %v499 = vsel %vm404, %v491, 0
        %501 = vmatpush.bf16.msra.mxu0 0
        %502 = vmatpush.bf16.msra.mxu0 0
        %503 = vmatpush.bf16.msra.mxu0 0
        %504 = vmatpush.bf16.msra.mxu0 0
        %505 = vmatpush.bf16.msra.mxu0 0
        %506 = vmatpush.bf16.msra.mxu0 0
        %507 = vmatpush.bf16.msra.mxu0 0
        %508 = vmatpush.bf16.msra.mxu0 %v496
        %509 = vmatmul.bf16.gmra.mxu0 %v493
        %v510 = vpop.f32.mrf.mxu0
        %v511 = vadd.f32 0.0, %v510
        %v512 = vpop.f32.mrf.mxu0
        %513 = vdwg.mxu0
        %514 = vmatpush.bf16.msra.mxu0 0
        %515 = vmatpush.bf16.msra.mxu0 0
        %516 = vmatpush.bf16.msra.mxu0 0
        %517 = vmatpush.bf16.msra.mxu0 0
        %518 = vmatpush.bf16.msra.mxu0 0
        %519 = vmatpush.bf16.msra.mxu0 0
        %520 = vmatpush.bf16.msra.mxu0 0
        %521 = vmatpush.bf16.msra.mxu0 %v499
        %522 = vmatmul.bf16.gmra.mxu0 %v493
        %v523 = vpop.f32.mrf.mxu0
        %v524 = vadd.f32 0.0, %v523
        %v525 = vpop.f32.mrf.mxu0
        %526 = vdwg.mxu0
        %v527 = vadd.f32 %v456, %v511
        %v528 = vadd.f32 %v469, %v524
        %529 = vrot.lane.b32.xlu0 %v358, 1
        %v530 = vpop.permute.xlu0 %529
        %531 = vrot.lane.b32.xlu0 %v359, 1
        %v532 = vpop.permute.xlu0 %531
        %vm533 = vcmp.lt.s32.totalorder %v365, 1
        %v534 = vsel %vm533, %v530, %v532
        %v535 = vsel %vm533, %v532, %v530
        %s536 = scalar_lea.vmem %s5, 6
        %v537 = vld [vmem:[%s536] sm:$0x3]
        %v539 = vperm.slane %v537, 0
        %v540 = vperm.slane %v537, 1
        %v543 = vmul.f32 %v535, %v539
        %v544 = vmul.f32 %v534, %v540
        %s545 = scalar_lea.vmem %s3, 12
        %v546 = vld [vmem:[%s545] sm:$0xf]
        %v547 = vpack.c.bf16 %v543, %v543
        %v548 = vpack.c.bf16 %v544, %v544
        %v550 = vsel %vm400, %v546, 0
        %v553 = vsel %vm404, %v547, 0
        %v556 = vsel %vm404, %v548, 0
        %558 = vmatpush.bf16.msra.mxu0 0
        %559 = vmatpush.bf16.msra.mxu0 0
        %560 = vmatpush.bf16.msra.mxu0 0
        %561 = vmatpush.bf16.msra.mxu0 0
        %562 = vmatpush.bf16.msra.mxu0 0
        %563 = vmatpush.bf16.msra.mxu0 0
        %564 = vmatpush.bf16.msra.mxu0 0
        %565 = vmatpush.bf16.msra.mxu0 %v553
        %566 = vmatmul.bf16.gmra.mxu0 %v550
        %v567 = vpop.f32.mrf.mxu0
        %v568 = vadd.f32 0.0, %v567
        %v569 = vpop.f32.mrf.mxu0
        %570 = vdwg.mxu0
        %571 = vmatpush.bf16.msra.mxu0 0
        %572 = vmatpush.bf16.msra.mxu0 0
        %573 = vmatpush.bf16.msra.mxu0 0
        %574 = vmatpush.bf16.msra.mxu0 0
        %575 = vmatpush.bf16.msra.mxu0 0
        %576 = vmatpush.bf16.msra.mxu0 0
        %577 = vmatpush.bf16.msra.mxu0 0
        %578 = vmatpush.bf16.msra.mxu0 %v556
        %579 = vmatmul.bf16.gmra.mxu0 %v550
        %v580 = vpop.f32.mrf.mxu0
        %v581 = vadd.f32 0.0, %v580
        %v582 = vpop.f32.mrf.mxu0
        %583 = vdwg.mxu0
        %v584 = vadd.f32 %v527, %v568
        %v585 = vadd.f32 %v528, %v581
        %s586 = scalar_lea.vmem %s3, 16
        %v587 = vld [vmem:[%s586] sm:$0xf]
        %v588 = vpack.c.bf16 %v358, %v358
        %v589 = vpack.c.bf16 %v359, %v359
        %v591 = vsel %vm400, %v587, 0
        %v594 = vsel %vm404, %v588, 0
        %v597 = vsel %vm404, %v589, 0
        %599 = vmatpush.bf16.msra.mxu0 0
        %600 = vmatpush.bf16.msra.mxu0 0
        %601 = vmatpush.bf16.msra.mxu0 0
        %602 = vmatpush.bf16.msra.mxu0 0
        %603 = vmatpush.bf16.msra.mxu0 0
        %604 = vmatpush.bf16.msra.mxu0 0
        %605 = vmatpush.bf16.msra.mxu0 0
        %606 = vmatpush.bf16.msra.mxu0 %v594
        %607 = vmatmul.bf16.gmra.mxu0 %v591
        %v608 = vpop.f32.mrf.mxu0
        %v609 = vadd.f32 0.0, %v608
        %v610 = vpop.f32.mrf.mxu0
        %611 = vdwg.mxu0
        %612 = vmatpush.bf16.msra.mxu0 0
        %613 = vmatpush.bf16.msra.mxu0 0
        %614 = vmatpush.bf16.msra.mxu0 0
        %615 = vmatpush.bf16.msra.mxu0 0
        %616 = vmatpush.bf16.msra.mxu0 0
        %617 = vmatpush.bf16.msra.mxu0 0
        %618 = vmatpush.bf16.msra.mxu0 0
        %619 = vmatpush.bf16.msra.mxu0 %v597
        %620 = vmatmul.bf16.gmra.mxu0 %v591
        %v621 = vpop.f32.mrf.mxu0
        %v622 = vadd.f32 0.0, %v621
        %v623 = vpop.f32.mrf.mxu0
        %624 = vdwg.mxu0
        %v625 = vadd.f32 %v584, %v609
        %v626 = vadd.f32 %v585, %v622
        %627 = vrot.lane.b32.xlu0 %v358, 127
        %v628 = vpop.permute.xlu0 %627
        %629 = vrot.lane.b32.xlu0 %v359, 127
        %v630 = vpop.permute.xlu0 %629
        %vm631 = vcmp.lt.s32.totalorder %v365, 127
        %v632 = vsel %vm631, %v628, %v630
        %v633 = vsel %vm631, %v630, %v628
        %s634 = scalar_lea.vmem %s5, 10
        %v635 = vld [vmem:[%s634] sm:$0x3]
        %v637 = vperm.slane %v635, 0
        %v638 = vperm.slane %v635, 1
        %v641 = vmul.f32 %v632, %v637
        %v642 = vmul.f32 %v633, %v638
        %s643 = scalar_lea.vmem %s3, 20
        %v644 = vld [vmem:[%s643] sm:$0xf]
        %v645 = vpack.c.bf16 %v641, %v641
        %v646 = vpack.c.bf16 %v642, %v642
        %v648 = vsel %vm400, %v644, 0
        %v651 = vsel %vm404, %v645, 0
        %v654 = vsel %vm404, %v646, 0
        %656 = vmatpush.bf16.msra.mxu0 0
        %657 = vmatpush.bf16.msra.mxu0 0
        %658 = vmatpush.bf16.msra.mxu0 0
        %659 = vmatpush.bf16.msra.mxu0 0
        %660 = vmatpush.bf16.msra.mxu0 0
        %661 = vmatpush.bf16.msra.mxu0 0
        %662 = vmatpush.bf16.msra.mxu0 0
        %663 = vmatpush.bf16.msra.mxu0 %v651
        %664 = vmatmul.bf16.gmra.mxu0 %v648
        %v665 = vpop.f32.mrf.mxu0
        %v666 = vadd.f32 0.0, %v665
        %v667 = vpop.f32.mrf.mxu0
        %668 = vdwg.mxu0
        %669 = vmatpush.bf16.msra.mxu0 0
        %670 = vmatpush.bf16.msra.mxu0 0
        %671 = vmatpush.bf16.msra.mxu0 0
        %672 = vmatpush.bf16.msra.mxu0 0
        %673 = vmatpush.bf16.msra.mxu0 0
        %674 = vmatpush.bf16.msra.mxu0 0
        %675 = vmatpush.bf16.msra.mxu0 0
        %676 = vmatpush.bf16.msra.mxu0 %v654
        %677 = vmatmul.bf16.gmra.mxu0 %v648
        %v678 = vpop.f32.mrf.mxu0
        %v679 = vadd.f32 0.0, %v678
        %v680 = vpop.f32.mrf.mxu0
        %681 = vdwg.mxu0
        %v682 = vadd.f32 %v625, %v666
        %v683 = vadd.f32 %v626, %v679
        %684 = vrot.lane.b32.xlu0 %v358, 113
        %v685 = vpop.permute.xlu0 %684
        %686 = vrot.lane.b32.xlu0 %v359, 113
        %v687 = vpop.permute.xlu0 %686
        %vm688 = vcmp.lt.s32.totalorder %v365, 113
        %v689 = vsel %vm688, %v685, %v687
        %v690 = vsel %vm688, %v687, %v685
        %s691 = scalar_lea.vmem %s5, 12
        %v692 = vld [vmem:[%s691] sm:$0x3]
        %v694 = vperm.slane %v692, 0
        %v695 = vperm.slane %v692, 1
        %v698 = vmul.f32 %v689, %v694
        %v699 = vmul.f32 %v690, %v695
        %s700 = scalar_lea.vmem %s3, 24
        %v701 = vld [vmem:[%s700] sm:$0xf]
        %v702 = vpack.c.bf16 %v698, %v698
        %v703 = vpack.c.bf16 %v699, %v699
        %v705 = vsel %vm400, %v701, 0
        %v708 = vsel %vm404, %v702, 0
        %v711 = vsel %vm404, %v703, 0
        %713 = vmatpush.bf16.msra.mxu0 0
        %714 = vmatpush.bf16.msra.mxu0 0
        %715 = vmatpush.bf16.msra.mxu0 0
        %716 = vmatpush.bf16.msra.mxu0 0
        %717 = vmatpush.bf16.msra.mxu0 0
        %718 = vmatpush.bf16.msra.mxu0 0
        %719 = vmatpush.bf16.msra.mxu0 0
        %720 = vmatpush.bf16.msra.mxu0 %v708
        %721 = vmatmul.bf16.gmra.mxu0 %v705
        %v722 = vpop.f32.mrf.mxu0
        %v723 = vadd.f32 0.0, %v722
        %v724 = vpop.f32.mrf.mxu0
        %725 = vdwg.mxu0
        %726 = vmatpush.bf16.msra.mxu0 0
        %727 = vmatpush.bf16.msra.mxu0 0
        %728 = vmatpush.bf16.msra.mxu0 0
        %729 = vmatpush.bf16.msra.mxu0 0
        %730 = vmatpush.bf16.msra.mxu0 0
        %731 = vmatpush.bf16.msra.mxu0 0
        %732 = vmatpush.bf16.msra.mxu0 0
        %733 = vmatpush.bf16.msra.mxu0 %v711
        %734 = vmatmul.bf16.gmra.mxu0 %v705
        %v735 = vpop.f32.mrf.mxu0
        %v736 = vadd.f32 0.0, %v735
        %v737 = vpop.f32.mrf.mxu0
        %738 = vdwg.mxu0
        %v739 = vadd.f32 %v682, %v723
        %v740 = vadd.f32 %v683, %v736
        %741 = vrot.lane.b32.xlu0 %v358, 112
        %v742 = vpop.permute.xlu0 %741
        %743 = vrot.lane.b32.xlu0 %v359, 112
        %v744 = vpop.permute.xlu0 %743
        %vm745 = vcmp.lt.s32.totalorder %v365, 112
        %v746 = vsel %vm745, %v742, %v744
        %v747 = vsel %vm745, %v744, %v742
        %s748 = scalar_lea.vmem %s5, 14
        %v749 = vld [vmem:[%s748] sm:$0x3]
        %v751 = vperm.slane %v749, 0
        %v752 = vperm.slane %v749, 1
        %v755 = vmul.f32 %v746, %v751
        %v756 = vmul.f32 %v747, %v752
        %s757 = scalar_lea.vmem %s3, 28
        %v758 = vld [vmem:[%s757] sm:$0xf]
        %v759 = vpack.c.bf16 %v755, %v755
        %v760 = vpack.c.bf16 %v756, %v756
        %v762 = vsel %vm400, %v758, 0
        %v765 = vsel %vm404, %v759, 0
        %v768 = vsel %vm404, %v760, 0
        %770 = vmatpush.bf16.msra.mxu0 0
        %771 = vmatpush.bf16.msra.mxu0 0
        %772 = vmatpush.bf16.msra.mxu0 0
        %773 = vmatpush.bf16.msra.mxu0 0
        %774 = vmatpush.bf16.msra.mxu0 0
        %775 = vmatpush.bf16.msra.mxu0 0
        %776 = vmatpush.bf16.msra.mxu0 0
        %777 = vmatpush.bf16.msra.mxu0 %v765
        %778 = vmatmul.bf16.gmra.mxu0 %v762
        %v779 = vpop.f32.mrf.mxu0
        %v780 = vadd.f32 0.0, %v779
        %v781 = vpop.f32.mrf.mxu0
        %782 = vdwg.mxu0
        %783 = vmatpush.bf16.msra.mxu0 0
        %784 = vmatpush.bf16.msra.mxu0 0
        %785 = vmatpush.bf16.msra.mxu0 0
        %786 = vmatpush.bf16.msra.mxu0 0
        %787 = vmatpush.bf16.msra.mxu0 0
        %788 = vmatpush.bf16.msra.mxu0 0
        %789 = vmatpush.bf16.msra.mxu0 0
        %790 = vmatpush.bf16.msra.mxu0 %v768
        %791 = vmatmul.bf16.gmra.mxu0 %v762
        %v792 = vpop.f32.mrf.mxu0
        %v793 = vadd.f32 0.0, %v792
        %v794 = vpop.f32.mrf.mxu0
        %795 = vdwg.mxu0
        %v796 = vadd.f32 %v739, %v780
        %v797 = vadd.f32 %v740, %v793
        %798 = vrot.lane.b32.xlu0 %v358, 111
        %v799 = vpop.permute.xlu0 %798
        %800 = vrot.lane.b32.xlu0 %v359, 111
        %v801 = vpop.permute.xlu0 %800
        %vm802 = vcmp.lt.s32.totalorder %v365, 111
        %v803 = vsel %vm802, %v799, %v801
        %v804 = vsel %vm802, %v801, %v799
        %s805 = scalar_lea.vmem %s5, 16
        %v806 = vld [vmem:[%s805] sm:$0x3]
        %v808 = vperm.slane %v806, 0
        %v809 = vperm.slane %v806, 1
        %v812 = vmul.f32 %v803, %v808
        %v813 = vmul.f32 %v804, %v809
        %s814 = scalar_lea.vmem %s3, 32
        %v815 = vld [vmem:[%s814] sm:$0xf]
        %v816 = vpack.c.bf16 %v812, %v812
        %v817 = vpack.c.bf16 %v813, %v813
        %v819 = vsel %vm400, %v815, 0
        %v822 = vsel %vm404, %v816, 0
        %v825 = vsel %vm404, %v817, 0
        %827 = vmatpush.bf16.msra.mxu0 0
        %828 = vmatpush.bf16.msra.mxu0 0
        %829 = vmatpush.bf16.msra.mxu0 0
        %830 = vmatpush.bf16.msra.mxu0 0
        %831 = vmatpush.bf16.msra.mxu0 0
        %832 = vmatpush.bf16.msra.mxu0 0
        %833 = vmatpush.bf16.msra.mxu0 0
        %834 = vmatpush.bf16.msra.mxu0 %v822
        %835 = vmatmul.bf16.gmra.mxu0 %v819
        %v836 = vpop.f32.mrf.mxu0
        %v837 = vadd.f32 0.0, %v836
        %v838 = vpop.f32.mrf.mxu0
        %839 = vdwg.mxu0
        %840 = vmatpush.bf16.msra.mxu0 0
        %841 = vmatpush.bf16.msra.mxu0 0
        %842 = vmatpush.bf16.msra.mxu0 0
        %843 = vmatpush.bf16.msra.mxu0 0
        %844 = vmatpush.bf16.msra.mxu0 0
        %845 = vmatpush.bf16.msra.mxu0 0
        %846 = vmatpush.bf16.msra.mxu0 0
        %847 = vmatpush.bf16.msra.mxu0 %v825
        %848 = vmatmul.bf16.gmra.mxu0 %v819
        %v849 = vpop.f32.mrf.mxu0
        %v850 = vadd.f32 0.0, %v849
        %v851 = vpop.f32.mrf.mxu0
        %852 = vdwg.mxu0
        %v853 = vadd.f32 %v796, %v837
        %v854 = vadd.f32 %v797, %v850
        %v855 = vld [vmem:[%s4] sm:$0xff]
        %857 = vset.pattern.permute.xlu0 0
        %858 = vperm.xlu0 %857, %v855
        %v859 = vpop.permute.xlu0 %858
        %v861 = vadd.f32 %v853, %v859
        %v862 = vadd.f32 %v854, %v859
        %v863 = vmax.f32 %v861, 0.0
        %v864 = vmax.f32 %v862, 0.0
        %v865 = vld [vmem:[%s6] sm:$0x3]
        %v866 = vpack.c.bf16 %v863, %v863
        %v867 = vpack.c.bf16 %v864, %v864
        %v868 = vld [vmem:[%s7] sm:$0xf]
        %870 = vset.pattern.permute.xlu0 0
        %871 = vperm.xlu0 %870, %v868
        %v872 = vpop.permute.xlu0 %871
        %v875 = vsel %vm400, %v865, 0
        %v878 = vsel %vm404, %v866, 0
        %v881 = vsel %vm404, %v867, 0
        %883 = vmatpush.bf16.msra.mxu0 0
        %884 = vmatpush.bf16.msra.mxu0 0
        %885 = vmatpush.bf16.msra.mxu0 0
        %886 = vmatpush.bf16.msra.mxu0 0
        %887 = vmatpush.bf16.msra.mxu0 0
        %888 = vmatpush.bf16.msra.mxu0 0
        %889 = vmatpush.bf16.msra.mxu0 0
        %890 = vmatpush.bf16.msra.mxu0 %v878
        %891 = vmatmul.bf16.gmra.mxu0 %v875
        %v892 = vpop.f32.mrf.mxu0
        %v893 = vadd.f32 %v872, %v892
        %v894 = vpop.f32.mrf.mxu0
        %895 = vdwg.mxu0
        %896 = vmatpush.bf16.msra.mxu0 0
        %897 = vmatpush.bf16.msra.mxu0 0
        %898 = vmatpush.bf16.msra.mxu0 0
        %899 = vmatpush.bf16.msra.mxu0 0
        %900 = vmatpush.bf16.msra.mxu0 0
        %901 = vmatpush.bf16.msra.mxu0 0
        %902 = vmatpush.bf16.msra.mxu0 0
        %903 = vmatpush.bf16.msra.mxu0 %v881
        %904 = vmatmul.bf16.gmra.mxu0 %v875
        %v905 = vpop.f32.mrf.mxu0
        %v906 = vadd.f32 %v872, %v905
        %v907 = vpop.f32.mrf.mxu0
        %908 = vdwg.mxu0
        %909 = vst [vmem:[#allocation1] ss:$2 sm:$0xff] %v305
        %v910 = vld.sshfl [vmem:[#allocation1] sm:$0xff pattern:$0x75316420]
        %v911 = vld.sshfl [vmem:[#allocation1 + $0x8] sm:$0xff pattern:$0x75316420]
        %v914 = vadd.f32 %v893, %v910
        %v915 = vadd.f32 %v906, %v911
        %v918 = vrot.slane %v915, 4
        %v919 = vsel %vm404, %v914, %v918
        %921 = vst [vmem:[%s298] sm:$0xff] %v919
        %s922 = sand.u32 %s203, 1
        %s923 = scalar_lea.sflag [#allocation3], %s922
        %s924 = sand.u32 %s203, 1
        %s925 = smul.addr %s924, 8
        %s926 = scalar_lea.vmem [#allocation2], %s925
        // Predicated region
        $region53: #{tpu_custom_call.1} parent=51 // pred_check
          %p927 = pneg %p213
        $region54: #{tpu_custom_call.1} parent=51 // pred_check_branch
          %929 = sbr.rel (%p927) target = $region56
        $region55: #{tpu_custom_call.1} parent=51 // pred_region
          %931 = vsyncadd %s923, 0
          %s932 = smul.addr %s22, 2
          %s933 = smul.addr %s932, 4
          %s934 = scalar_lea.hbm %s8, %s933
          %s936 = sshll.u32 %s926, 4
          %s937 = int_to_ptr.vmem [resolvable:$true] %s936
          %s938 = sshll.u32 %s934, 4
          %s939 = int_to_ptr.hbm [resolvable:$true] %s938
          %941 = dma.vmem_to_hbm [thread:$0]  %s937, 128, %s939, %s923
        $region56: #{tpu_custom_call.1} parent=51 // pred_fallthru
          _
      $region52: #{tpu_custom_call.1} parent=5 // pred_fallthru
        _
      %p942 = scmp.le.s32.totalorder 2, %s17
      // Predicated region
      $region57: #{tpu_custom_call.1} parent=5 // pred_check
        %p943 = pneg %p942
      $region58: #{tpu_custom_call.1} parent=5 // pred_check_branch
        %945 = sbr.rel (%p943) target = $region60
      $region59: #{tpu_custom_call.1} parent=5 // pred_region
        %s946 = ssub.s32 %s17, 2
        // Predicated region
        $region61: #{tpu_custom_call.1} parent=59 // pred_check
          %p947 = pneg %p219
        $region62: #{tpu_custom_call.1} parent=59 // pred_check_branch
          %949 = sbr.rel (%p947) target = $region64
        $region63: #{tpu_custom_call.1} parent=59 // pred_region
          %s950 = sand.u32 %s204, 1
          %s951 = scalar_lea.sflag [#allocation3], %s950
          %s952 = sand.u32 %s204, 1
          %s953 = smul.addr %s952, 8
          %s954 = scalar_lea.vmem [#allocation2], %s953
          %956 = dma.done %s951, 128
        $region64: #{tpu_custom_call.1} parent=59 // pred_fallthru
          _
      $region60: #{tpu_custom_call.1} parent=5 // pred_fallthru
        _
    $region6: #{tpu_custom_call.1} parent=1 // loop_footer
      %s21 = sadd.s32 1, %s17
    $region7: #{tpu_custom_call.1} parent=1 // loop_footer_branch
      %16 = sbr.rel target = $region3
    $region8: #{tpu_custom_call.1} parent=1 // loop_exit
      _
    %957 = vsyncpa [#allocation3], 1
    %s958 = scalar_lea.sflag [#allocation3], 1
    %959 = vsyncpa %s958, 1

</llo_original>
